<compile_context>
chip_gen: v7x
topology: tpu7x:2x2x1
jax: 0.10.0
libtpu: 0.0.40
codegen_flags: <defaults>
</compile_context>

<pallas_src>
import functools
import math

import jax
import jax.numpy as jnp
from jax.experimental import pallas as pl
from jax.experimental.pallas import tpu as pltpu


_conj = lambda x: jnp.concatenate([x, jnp.conj(x)], axis=-1)


def _round_up(x, m):
    return ((x + m - 1) // m) * m


# ---------------------------------------------------------------------------
# Pallas kernel: conjugate-symmetric Cauchy reduction
#   r[m, l] = sum_n [ v[m,n]/(z[l]-w[n]) + conj(v[m,n])/(z[l]-conj(w[n])) ]
# ---------------------------------------------------------------------------
def _cauchy_kernel(v_ref, wr_ref, wi_ref, zr_ref, zi_ref, rr_ref, ri_ref,
                   rhs_a_ref, rhs_b_ref, *, n_p):
    wr = wr_ref[...]                     # (N_p, 1)
    wi = wi_ref[...]
    zr = zr_ref[...]                     # (1, TL)
    zi = zi_ref[...]

    d1r = zr - wr                        # (N_p, TL)  Re(z - w) == Re(z - conj(w))
    d1i = zi - wi                        # Im(z - w)
    d2i = zi + wi                        # Im(z - conj(w))
    d1r2 = d1r * d1r
    den1 = d1r2 + d1i * d1i
    den2 = d1r2 + d2i * d2i

    # Approx reciprocal runs on the (otherwise idle) EUP slot; one Newton step
    # restores ~f32 accuracy so the 1e-3 validation tolerance is safe.
    inv1 = pl.reciprocal(den1, approx=True)
    inv1 = inv1 * (2.0 - den1 * inv1)
    inv2 = pl.reciprocal(den2, approx=True)
    inv2 = inv2 * (2.0 - den2 * inv2)

    p = d1i * inv1
    q = d2i * inv2

    # Write the four combined RHS planes straight into the stacked buffers
    # fed to the MXU (no a1r/a1i/a2r/a2i temporaries, no concat copies).
    #   rr = vr @ (a1r+a2r) + vi @ (a2i-a1i)
    #   ri = vr @ (a1i+a2i) + vi @ (a1r-a2r)
    rhs_a_ref[pl.ds(0, n_p), :] = d1r * (inv1 + inv2)    # rr <- vr coefficient
    rhs_a_ref[pl.ds(n_p, n_p), :] = p - q                # rr <- vi coefficient
    rhs_b_ref[pl.ds(0, n_p), :] = -(p + q)               # ri <- vr coefficient
    rhs_b_ref[pl.ds(n_p, n_p), :] = d1r * (inv1 - inv2)  # ri <- vi coefficient

    lhs = v_ref[...]                     # (M_p, 2*N_p) = [vr | vi]
    rr_ref[...] = jnp.dot(lhs, rhs_a_ref[...], preferred_element_type=jnp.float32)
    ri_ref[...] = jnp.dot(lhs, rhs_b_ref[...], preferred_element_type=jnp.float32)


def cauchy_symmetric_pallas(v, z, w, *, tl_max=1024):
    """r[h,a,b,l] = sum_n v[a,b,h,n]/(z[l]-w[h,n]) + conj(v[a,b,h,n])/(z[l]-conj(w[h,n]))

    v: (A, B, H, N) complex64, z: (Lf,) complex64, w: (H, N) complex64
    returns (H, A, B, Lf) complex64  (H-first layout: no big transpose needed)
    """
    A, B, H, N = v.shape
    Lf = z.shape[0]
    M = A * B

    # Sublane axes padded only to multiples of 8; lane (frequency) axis padded
    # to a multiple of 128 and tiled in TL-wide chunks (TL multiple of 128).
    M_p = _round_up(max(M, 8), 8)
    N_p = _round_up(max(N, 8), 8)
    L_128 = _round_up(max(Lf, 128), 128)
    if L_128 <= tl_max:
        TL = L_128
        L_p = L_128
    else:
        TL = tl_max
        L_p = _round_up(Lf, TL)
    n_l = L_p // TL

    # Pad values chosen so padded denominators are finite and padded v rows
    # are exactly zero (padded contributions vanish; padded L columns are
    # garbage-but-finite and sliced off).
    v_hm = jnp.transpose(v, (2, 0, 1, 3)).reshape(H, M, N)
    v_packed = jnp.zeros((H, M_p, 2 * N_p), jnp.float32)
    v_packed = v_packed.at[:, :M, :N].set(jnp.real(v_hm).astype(jnp.float32))
    v_packed = v_packed.at[:, :M, N_p:N_p + N].set(jnp.imag(v_hm).astype(jnp.float32))
    wr = jnp.full((H, N_p, 1), -1.0, jnp.float32).at[:, :N, 0].set(
        jnp.real(w).astype(jnp.float32))
    wi = jnp.zeros((H, N_p, 1), jnp.float32).at[:, :N, 0].set(
        jnp.imag(w).astype(jnp.float32))
    zr = jnp.full((1, L_p), 1.0, jnp.float32).at[0, :Lf].set(
        jnp.real(z).astype(jnp.float32))
    zi = jnp.zeros((1, L_p), jnp.float32).at[0, :Lf].set(
        jnp.imag(z).astype(jnp.float32))

    kernel = functools.partial(_cauchy_kernel, n_p=N_p)
    rr, ri = pl.pallas_call(
        kernel,
        out_shape=[jax.ShapeDtypeStruct((H, M_p, L_p), jnp.float32)] * 2,
        grid=(H, n_l),
        in_specs=[
            pl.BlockSpec((None, M_p, 2 * N_p), lambda h, l: (h, 0, 0)),
            pl.BlockSpec((None, N_p, 1), lambda h, l: (h, 0, 0)),
            pl.BlockSpec((None, N_p, 1), lambda h, l: (h, 0, 0)),
            pl.BlockSpec((1, TL), lambda h, l: (0, l)),
            pl.BlockSpec((1, TL), lambda h, l: (0, l)),
        ],
        out_specs=[
            pl.BlockSpec((None, M_p, TL), lambda h, l: (h, 0, l)),
            pl.BlockSpec((None, M_p, TL), lambda h, l: (h, 0, l)),
        ],
        scratch_shapes=[
            pltpu.VMEM((2 * N_p, TL), jnp.float32),
            pltpu.VMEM((2 * N_p, TL), jnp.float32),
        ],
        compiler_params=pltpu.CompilerParams(
            dimension_semantics=("parallel", "parallel")),
    )(v_packed, wr, wi, zr, zi)

    if M_p != M or L_p != Lf:
        rr = rr[:, :M, :Lf]
        ri = ri[:, :M, :Lf]
    r = (rr + 1j * ri).astype(jnp.complex64)
    return r.reshape(H, A, B, Lf)        # H-first; cheap contiguous reshape


# ---------------------------------------------------------------------------
# SSKernelNPLR (forward-pass port)
# ---------------------------------------------------------------------------
class SSKernelNPLR:
    """JAX/Pallas port of the S4 SSKernelNPLR forward pass.

    Parameters (complex64 unless noted):
      w:      (n_ssm, N)        diagonal part of A (half the state, conj pairs)
      P:      (rank, n_ssm, N)  low-rank correction
      B:      (n_ssm, N)
      C:      (channels, H, N)
      log_dt: (H,) float32
    """

    def __init__(self, w, P, B, C, log_dt, L=None, fast_gate=False, quadrature=None):
        self.rank = P.shape[-3]
        self.H = log_dt.shape[-1]
        self.N = w.shape[-1]
        self.n_ssm = w.shape[0]
        assert self.H % self.n_ssm == 0
        self.copies = self.H // self.n_ssm
        self.C = jnp.broadcast_to(
            C, jnp.broadcast_shapes(C.shape, (1, self.H, self.N))).astype(jnp.complex64)
        self.B = B[None].astype(jnp.complex64)              # (1, n_ssm, N)
        self.P = P.astype(jnp.complex64)                    # (rank, n_ssm, N)
        self.log_dt = log_dt.astype(jnp.float32)
        self.log_w_real = jnp.log(-jnp.real(w) + 0.001).astype(jnp.float32)
        self.w_imag = jnp.imag(w).astype(jnp.float32)
        self.l_max = L
        self.L = 0
        self.fast_gate = fast_gate
        self.quadrature = quadrature

    # ------------------------------------------------------------------
    def _w(self):
        return (-jnp.exp(self.log_w_real) + 1j * self.w_imag).astype(jnp.complex64)

    def _omega(self, L):
        omega = jnp.exp(-2j * jnp.pi / L).astype(jnp.complex64) ** jnp.arange(L // 2 + 1)
        z = 2 * (1 - omega) / (1 + omega)
        return omega, z

    def _repeat_all(self):
        B = jnp.tile(self.B, (1, self.copies, 1))           # (1, H, N)
        P = jnp.tile(self.P, (1, self.copies, 1))           # (r, H, N)
        Q = jnp.conj(P)
        w = jnp.tile(self._w(), (self.copies, 1))           # (H, N)
        return B, P, Q, w

    # -------- one-time parameter setup (plain JAX, mirrors torch @no_grad) ----
    def _setup_state(self):
        """Construct dA (H, 2N, 2N) of the discretized (bilinear) state equation."""
        _, P, Q, w = self._repeat_all()
        dt = jnp.exp(self.log_dt)
        D = 1.0 / (2.0 / dt[:, None] - w)                                    # (H, N)
        R_mat = (jnp.eye(self.rank, dtype=jnp.float32)
                 + 2.0 * jnp.real(jnp.einsum('rhn,hn,shn->hrs', Q, D, P)))  # (H, r, r)
        Q_D = jnp.einsum('rhn,hn->hrn', Q, D)                                # (H, r, N)
        if self.rank == 1:
            R_sol = Q_D / R_mat.astype(Q_D.dtype)
        else:
            R_sol = jnp.linalg.solve(R_mat.astype(Q_D.dtype), Q_D)
        R = jnp.transpose(R_sol, (1, 0, 2))                                  # (r, H, N)
        E = 2.0 / dt[:, None] + w                                            # (H, N)

        Dc, Ec, Rc, Pc, Qc = map(_conj, (D, E, R, P, Q))                     # (..., 2N)
        I2N = jnp.eye(2 * self.N, dtype=jnp.complex64)
        # linear step applied to the identity (u = 0)
        ns = Ec[None, :, :] * I2N[:, None, :] - jnp.einsum('rhn,rhm,bm->bhn', Pc, Qc, I2N)
        ns = Dc[None, :, :] * (ns - jnp.einsum('rhn,rhm,bhm->bhn', Pc, Rc, ns))
        dA = jnp.transpose(ns, (1, 2, 0))                                    # (H, 2N, 2N)
        # NOTE: dB of the reference _setup_state is not needed by forward().
        return dA

    @staticmethod
    def _power(A, L):
        out = jnp.broadcast_to(jnp.eye(A.shape[-1], dtype=A.dtype), A.shape)
        base = A
        while L > 0:
            if L % 2 == 1:
                out = out @ base
            base = base @ base
            L //= 2
        return out

    def _setup_C(self, L):
        """C~ = C (I - dA^L); updates self.C and self.L."""
        if self.L == 0:
            double_length = False
        elif L > self.L:
            double_length = True
            L = self.L
        else:
            return
        dA = self._setup_state()
        dA_L = self._power(dA, L)                                            # (H, 2N, 2N)
        C_ = _conj(self.C)                                                   # (c, H, 2N)
        prod = jnp.einsum('hnm,chn->chm', dA_L, C_)
        if double_length:
            prod = -prod
        C_ = (C_ - prod)[..., :self.N]
        self.C = C_.astype(jnp.complex64)
        self.L = 2 * self.L if double_length else self.L + L

    # ------------------------------- forward ----------------------------------
    def forward(self, state=None, rate=1.0, L=None):
        if self.L == 0 and self.l_max is not None and self.l_max > 0:
            self._setup_C(self.l_max)
        assert not (rate is None and L is None)
        if rate is None:
            rate = self.L / L
        if L is None:
            L = round(self.L / rate)
        continuous_L = round(rate * L)
        while continuous_L > self.L:
            self._setup_C(continuous_L)
        discrete_L = round(self.L / rate)

        if self.fast_gate:
            dt = jnp.exp(jnp.sinh(self.log_dt)) * rate
        else:
            dt = jnp.exp(self.log_dt) * rate

        C = self.C
        B, P, Q, w = self._repeat_all()
        omega, z = self._omega(discrete_L)

        if state is not None:
            s = _conj(state) if state.shape[-1] == self.N else state
            sA = s * _conj(w) - jnp.einsum('bhm,rhm,rhn->bhn', s, _conj(Q), _conj(P))
            s = s / dt[:, None] + sA / 2
            s = s[..., :self.N]
            B = jnp.concatenate([s, B], axis=-3)

        w = w * dt[:, None]
        Bc = jnp.concatenate([B, P], axis=-3)        # (s+1+r, H, N)
        Cc = jnp.concatenate([C, Q], axis=-3)        # (c+r, H, N)
        v = Bc[:, None, :, :] * Cc[None, :, :, :]    # (s+1+r, c+r, H, N)

        # ---- Pallas hot path: conjugate-symmetric Cauchy reduction ----
        # Returned H-first (H, s+1+r, c+r, Lf) so the big complex transpose
        # of the old layout disappears; only a small real transpose remains
        # at the very end.
        r = cauchy_symmetric_pallas(v, z, w)
        r = r * dt[:, None, None, None]

        rank = self.rank
        if rank == 1:
            k_f = (r[:, :-1, :-1]
                   - r[:, :-1, -1:] * r[:, -1:, :-1] / (1 + r[:, -1:, -1:]))
        elif rank == 2:
            r00 = r[:, :-rank, :-rank]
            r01 = r[:, :-rank, -rank:]
            r10 = r[:, -rank:, :-rank]
            r11 = r[:, -rank:, -rank:]
            det = ((1 + r11[:, :1, :1]) * (1 + r11[:, 1:, 1:])
                   - r11[:, :1, 1:] * r11[:, 1:, :1])
            s_ = (r01[:, :, :1] * (1 + r11[:, 1:, 1:]) * r10[:, :1, :]
                  + r01[:, :, 1:] * (1 + r11[:, :1, :1]) * r10[:, 1:, :]
                  - r01[:, :, :1] * r11[:, :1, 1:] * r10[:, 1:, :]
                  - r01[:, :, 1:] * r11[:, 1:, :1] * r10[:, :1, :])
            k_f = r00 - s_ / det
        else:
            r00 = r[:, :-rank, :-rank]
            r01 = r[:, :-rank, -rank:]
            r10 = r[:, -rank:, :-rank]
            r11 = r[:, -rank:, -rank:]
            r11 = jnp.transpose(r11, (0, 3, 1, 2))               # (H, L, r, r)
            r11 = jnp.linalg.inv(jnp.eye(rank, dtype=r.dtype) + r11)
            r11 = jnp.transpose(r11, (0, 2, 3, 1))               # (H, r, r, L)
            k_f = r00 - jnp.einsum('hijn,hjkn,hkln->hiln', r01, r11, r10)

        k_f = k_f * 2 / (1 + omega)
        # TODO(synk): irfft has no Pallas primitive; it stays in plain JAX (XLA TPU FFT).
        k = jnp.fft.irfft(k_f, n=discrete_L)                     # (H, s+1, c, L')
        k = k[..., :L]

        if state is not None:
            k_state = jnp.transpose(k[:, :-1], (1, 2, 0, 3))     # (s, c, H, L)
        else:
            k_state = None
        k_B = jnp.transpose(k[:, -1], (1, 0, 2))                 # (c, H, L)

        if self.quadrature == 'trapezoid':
            wq = jnp.ones_like(k_B) * dt[None, :, None]
            wq = wq.at[..., 0].set(wq[..., 0] / 2.0)
            wq = wq.at[..., -1].set(wq[..., -1] / 2.0)
            k_B = k_B * wq
        elif self.quadrature == 'simpson':
            wq = jnp.ones_like(k_B) * dt[None, :, None] / 3.0
            wq = wq.at[..., 1:-1:2].set(wq[..., 1:-1:2] * 4)
            wq = wq.at[..., 2:-1:2].set(wq[..., 2:-1:2] * 2)
            k_B = k_B * wq

        return k_B, k_state


# ---------------------------------------------------------------------------
if __name__ == "__main__":
    # Small deterministic configuration (half state N=4, H=4 features,
    # n_ssm=2 independent SSMs tied 2x, rank-1 correction, 1 output channel,
    # kernel length L=16).
    N, H, n_ssm, rank, channels, L = 4, 4, 2, 1, 1, 16

    key = jax.random.PRNGKey(0)
    ks = jax.random.split(key, 12)
    w_real = -0.5 * jnp.exp(0.25 * jax.random.normal(ks[0], (n_ssm, N)))
    w_imag = jnp.pi * (jnp.arange(N, dtype=jnp.float32)[None, :]
                       + 0.1 * jax.random.normal(ks[1], (n_ssm, N)))
    w = (w_real + 1j * w_imag).astype(jnp.complex64)
    P = (0.3 * (jax.random.normal(ks[2], (rank, n_ssm, N))
                + 1j * jax.random.normal(ks[3], (rank, n_ssm, N)))).astype(jnp.complex64)
    B = (jax.random.normal(ks[4], (n_ssm, N))
         + 1j * jax.random.normal(ks[5], (n_ssm, N))).astype(jnp.complex64)
    C = (jax.random.normal(ks[6], (channels, H, N))
         + 1j * jax.random.normal(ks[7], (channels, H, N))).astype(jnp.complex64)
    log_dt = jnp.linspace(math.log(0.001), math.log(0.1), H).astype(jnp.float32)

    # --- sanity check 1: Pallas Cauchy kernel vs pure-jnp reference ---
    def cauchy_ref(v, z, wv):
        vc = _conj(v)
        wc = _conj(wv)
        return jnp.sum(vc[..., None] / (z - wc[..., None]), axis=-2)

    vt = (jax.random.normal(ks[8], (2, 2, H, N))
          + 1j * jax.random.normal(ks[9], (2, 2, H, N))).astype(jnp.complex64)
    zt = (0.1 + 0.5j * jnp.arange(1, L // 2 + 2)).astype(jnp.complex64)
    wt = jnp.tile(w, (H // n_ssm, 1))
    r_pallas = jax.block_until_ready(cauchy_symmetric_pallas(vt, zt, wt))
    r_pallas = jnp.transpose(r_pallas, (1, 2, 0, 3))          # back to (A,B,H,L)
    r_ref = cauchy_ref(vt, zt, wt)
    err = float(jnp.max(jnp.abs(r_pallas - r_ref)))
    tol = 1e-3 * (1.0 + float(jnp.max(jnp.abs(r_ref))))
    assert err < tol, f"Cauchy kernel mismatch: {err} >= {tol}"

    # --- sanity check 2: exercise the multi-tile L path (2 frequency tiles) ---
    Lf2 = 200
    zt2 = (0.05 + 0.3j * jnp.arange(1, Lf2 + 1)).astype(jnp.complex64)
    r_pallas2 = jax.block_until_ready(
        cauchy_symmetric_pallas(vt, zt2, wt, tl_max=128))
    r_pallas2 = jnp.transpose(r_pallas2, (1, 2, 0, 3))
    r_ref2 = cauchy_ref(vt, zt2, wt)
    err2 = float(jnp.max(jnp.abs(r_pallas2 - r_ref2)))
    tol2 = 1e-3 * (1.0 + float(jnp.max(jnp.abs(r_ref2))))
    assert err2 < tol2, f"Cauchy kernel (tiled L) mismatch: {err2} >= {tol2}"

    # --- full SSKernelNPLR forward ---
    kernel_mod = SSKernelNPLR(w, P, B, C, log_dt, L=L)
    k_B, k_state = kernel_mod.forward(L=L)
    k_B = jax.block_until_ready(k_B)

    assert k_B.shape == (channels, H, L), k_B.shape
    assert k_state is None
    assert bool(jnp.all(jnp.isfinite(k_B)))
    print("KERNEL_OK")
</pallas_src>

<mosaic_0001>
module attributes {stable_mosaic.version = 11 : i64} {
  func.func @_cauchy_kernel(%arg0: i32, %arg1: i32, %arg2: memref<1x8x16xf32, #tpu.memory_space<vmem>>, %arg3: memref<1x8x1xf32, #tpu.memory_space<vmem>>, %arg4: memref<1x8x1xf32, #tpu.memory_space<vmem>>, %arg5: memref<1x128xf32, #tpu.memory_space<vmem>>, %arg6: memref<1x128xf32, #tpu.memory_space<vmem>>, %arg7: memref<1x8x128xf32, #tpu.memory_space<vmem>>, %arg8: memref<1x8x128xf32, #tpu.memory_space<vmem>>, %arg9: memref<16x128xf32, #tpu.memory_space<vmem>>, %arg10: memref<16x128xf32, #tpu.memory_space<vmem>>) attributes {dimension_semantics = [#tpu.dimension_semantics<parallel>, #tpu.dimension_semantics<parallel>], iteration_bounds = array<i64: 4, 1>, scalar_prefetch = 0 : i64, scratch_operands = 2 : i64, tpu.core_type = #tpu.core_type<tc>, window_params = [{transform_indices = @transform_0, window_bounds = array<i64: 1, 8, 16>}, {transform_indices = @transform_1, window_bounds = array<i64: 1, 8, 1>}, {transform_indices = @transform_2, window_bounds = array<i64: 1, 8, 1>}, {transform_indices = @transform_3, window_bounds = array<i64: 1, 128>}, {transform_indices = @transform_4, window_bounds = array<i64: 1, 128>}, {transform_indices = @transform_5, window_bounds = array<i64: 1, 8, 128>}, {transform_indices = @transform_6, window_bounds = array<i64: 1, 8, 128>}]} {
    %c0 = arith.constant 0 : index
    %c0_0 = arith.constant 0 : index
    %c0_1 = arith.constant 0 : index
    %0 = vector.load %arg3[%c0, %c0_0, %c0_1] : memref<1x8x1xf32, #tpu.memory_space<vmem>>, vector<1x8x1xf32>
    %1 = vector.shape_cast %0 : vector<1x8x1xf32> to vector<8x1xf32>
    %c0_2 = arith.constant 0 : index
    %c0_3 = arith.constant 0 : index
    %c0_4 = arith.constant 0 : index
    %2 = vector.load %arg4[%c0_2, %c0_3, %c0_4] : memref<1x8x1xf32, #tpu.memory_space<vmem>>, vector<1x8x1xf32>
    %3 = vector.shape_cast %2 : vector<1x8x1xf32> to vector<8x1xf32>
    %c0_5 = arith.constant 0 : index
    %c0_6 = arith.constant 0 : index
    %4 = vector.load %arg5[%c0_5, %c0_6] : memref<1x128xf32, #tpu.memory_space<vmem>>, vector<1x128xf32>
    %c0_7 = arith.constant 0 : index
    %c0_8 = arith.constant 0 : index
    %5 = vector.load %arg6[%c0_7, %c0_8] : memref<1x128xf32, #tpu.memory_space<vmem>>, vector<1x128xf32>
    %6 = vector.broadcast %4 : vector<1x128xf32> to vector<8x128xf32>
    %7 = vector.broadcast %1 : vector<8x1xf32> to vector<8x128xf32>
    %8 = arith.subf %6, %7 : vector<8x128xf32>
    %9 = vector.broadcast %5 : vector<1x128xf32> to vector<8x128xf32>
    %10 = vector.broadcast %3 : vector<8x1xf32> to vector<8x128xf32>
    %11 = arith.subf %9, %10 : vector<8x128xf32>
    %12 = vector.broadcast %5 : vector<1x128xf32> to vector<8x128xf32>
    %13 = vector.broadcast %3 : vector<8x1xf32> to vector<8x128xf32>
    %14 = arith.addf %12, %13 : vector<8x128xf32>
    %15 = arith.mulf %8, %8 : vector<8x128xf32>
    %16 = arith.mulf %11, %11 : vector<8x128xf32>
    %17 = arith.addf %15, %16 : vector<8x128xf32>
    %18 = arith.mulf %14, %14 : vector<8x128xf32>
    %19 = arith.addf %15, %18 : vector<8x128xf32>
    %20 = tpu.reciprocal %17 {approx = true} : vector<8x128xf32> -> vector<8x128xf32>
    %21 = arith.mulf %17, %20 : vector<8x128xf32>
    %cst = arith.constant 2.000000e+00 : f32
    %22 = vector.broadcast %cst : f32 to vector<8x128xf32>
    %23 = arith.subf %22, %21 : vector<8x128xf32>
    %24 = arith.mulf %20, %23 : vector<8x128xf32>
    %25 = tpu.reciprocal %19 {approx = true} : vector<8x128xf32> -> vector<8x128xf32>
    %26 = arith.mulf %19, %25 : vector<8x128xf32>
    %cst_9 = arith.constant 2.000000e+00 : f32
    %27 = vector.broadcast %cst_9 : f32 to vector<8x128xf32>
    %28 = arith.subf %27, %26 : vector<8x128xf32>
    %29 = arith.mulf %25, %28 : vector<8x128xf32>
    %30 = arith.mulf %11, %24 : vector<8x128xf32>
    %31 = arith.mulf %14, %29 : vector<8x128xf32>
    %32 = arith.addf %24, %29 : vector<8x128xf32>
    %33 = arith.mulf %8, %32 : vector<8x128xf32>
    %c0_10 = arith.constant 0 : index
    %c0_11 = arith.constant 0 : index
    %34 = vector.load %arg9[%c0_10, %c0_11] : memref<16x128xf32, #tpu.memory_space<vmem>>, vector<8x128xf32>
    tpu.vector_store %arg9[%c0_10, %c0_11], %33 {strides = array<i32>} : memref<16x128xf32, #tpu.memory_space<vmem>>, vector<8x128xf32>,
    %35 = arith.subf %30, %31 : vector<8x128xf32>
    %c8 = arith.constant 8 : index
    %c0_12 = arith.constant 0 : index
    %36 = vector.load %arg9[%c8, %c0_12] : memref<16x128xf32, #tpu.memory_space<vmem>>, vector<8x128xf32>
    tpu.vector_store %arg9[%c8, %c0_12], %35 {strides = array<i32>} : memref<16x128xf32, #tpu.memory_space<vmem>>, vector<8x128xf32>,
    %37 = arith.addf %30, %31 : vector<8x128xf32>
    %cst_13 = arith.constant 0.000000e+00 : f32
    %38 = vector.broadcast %cst_13 : f32 to vector<8x128xf32>
    %39 = arith.subf %38, %37 : vector<8x128xf32>
    %c0_14 = arith.constant 0 : index
    %c0_15 = arith.constant 0 : index
    %40 = vector.load %arg10[%c0_14, %c0_15] : memref<16x128xf32, #tpu.memory_space<vmem>>, vector<8x128xf32>
    tpu.vector_store %arg10[%c0_14, %c0_15], %39 {strides = array<i32>} : memref<16x128xf32, #tpu.memory_space<vmem>>, vector<8x128xf32>,
    %41 = arith.subf %24, %29 : vector<8x128xf32>
    %42 = arith.mulf %8, %41 : vector<8x128xf32>
    %c8_16 = arith.constant 8 : index
    %c0_17 = arith.constant 0 : index
    %43 = vector.load %arg10[%c8_16, %c0_17] : memref<16x128xf32, #tpu.memory_space<vmem>>, vector<8x128xf32>
    tpu.vector_store %arg10[%c8_16, %c0_17], %42 {strides = array<i32>} : memref<16x128xf32, #tpu.memory_space<vmem>>, vector<8x128xf32>,
    %c0_18 = arith.constant 0 : index
    %c0_19 = arith.constant 0 : index
    %c0_20 = arith.constant 0 : index
    %44 = vector.load %arg2[%c0_18, %c0_19, %c0_20] : memref<1x8x16xf32, #tpu.memory_space<vmem>>, vector<1x8x16xf32>
    %45 = vector.shape_cast %44 : vector<1x8x16xf32> to vector<8x16xf32>
    %c0_21 = arith.constant 0 : index
    %c0_22 = arith.constant 0 : index
    %46 = vector.load %arg9[%c0_21, %c0_22] : memref<16x128xf32, #tpu.memory_space<vmem>>, vector<16x128xf32>
    %cst_23 = arith.constant dense<0.000000e+00> : vector<8x128xf32>
    %47 = tpu.matmul %45, %46, %cst_23 {dimension_numbers = #tpu.dot_dimension_numbers<[1], [0], [0], [1], [0, 0, 1, 1], [], []>} : vector<8x16xf32>, vector<16x128xf32>, vector<8x128xf32> -> vector<8x128xf32>
    %c0_24 = arith.constant 0 : index
    %c0_25 = arith.constant 0 : index
    %c0_26 = arith.constant 0 : index
    %48 = vector.load %arg7[%c0_24, %c0_25, %c0_26] : memref<1x8x128xf32, #tpu.memory_space<vmem>>, vector<1x8x128xf32>
    %49 = vector.shape_cast %48 : vector<1x8x128xf32> to vector<8x128xf32>
    %50 = vector.shape_cast %47 : vector<8x128xf32> to vector<1x8x128xf32>
    tpu.vector_store %arg7[%c0_24, %c0_25, %c0_26], %50 {strides = array<i32>} : memref<1x8x128xf32, #tpu.memory_space<vmem>>, vector<1x8x128xf32>,
    %c0_27 = arith.constant 0 : index
    %c0_28 = arith.constant 0 : index
    %51 = vector.load %arg10[%c0_27, %c0_28] : memref<16x128xf32, #tpu.memory_space<vmem>>, vector<16x128xf32>
    %cst_29 = arith.constant dense<0.000000e+00> : vector<8x128xf32>
    %52 = tpu.matmul %45, %51, %cst_29 {dimension_numbers = #tpu.dot_dimension_numbers<[1], [0], [0], [1], [0, 0, 1, 1], [], []>} : vector<8x16xf32>, vector<16x128xf32>, vector<8x128xf32> -> vector<8x128xf32>
    %c0_30 = arith.constant 0 : index
    %c0_31 = arith.constant 0 : index
    %c0_32 = arith.constant 0 : index
    %53 = vector.load %arg8[%c0_30, %c0_31, %c0_32] : memref<1x8x128xf32, #tpu.memory_space<vmem>>, vector<1x8x128xf32>
    %54 = vector.shape_cast %53 : vector<1x8x128xf32> to vector<8x128xf32>
    %55 = vector.shape_cast %52 : vector<8x128xf32> to vector<1x8x128xf32>
    tpu.vector_store %arg8[%c0_30, %c0_31, %c0_32], %55 {strides = array<i32>} : memref<1x8x128xf32, #tpu.memory_space<vmem>>, vector<1x8x128xf32>,
    return
  }
  func.func @transform_0(%arg0: i32, %arg1: i32) -> (i32, i32, i32) {
    %c0_i32 = arith.constant 0 : i32
    %c0_i32_0 = arith.constant 0 : i32
    %c0_i32_1 = arith.constant 0 : i32
    return %arg0, %c0_i32, %c0_i32_0 : i32, i32, i32
  }
  func.func @transform_1(%arg0: i32, %arg1: i32) -> (i32, i32, i32) {
    %c0_i32 = arith.constant 0 : i32
    %c0_i32_0 = arith.constant 0 : i32
    %c0_i32_1 = arith.constant 0 : i32
    return %arg0, %c0_i32, %c0_i32_0 : i32, i32, i32
  }
  func.func @transform_2(%arg0: i32, %arg1: i32) -> (i32, i32, i32) {
    %c0_i32 = arith.constant 0 : i32
    %c0_i32_0 = arith.constant 0 : i32
    %c0_i32_1 = arith.constant 0 : i32
    return %arg0, %c0_i32, %c0_i32_0 : i32, i32, i32
  }
  func.func @transform_3(%arg0: i32, %arg1: i32) -> (i32, i32) {
    %c0_i32 = arith.constant 0 : i32
    %c0_i32_0 = arith.constant 0 : i32
    return %c0_i32, %arg1 : i32, i32
  }
  func.func @transform_4(%arg0: i32, %arg1: i32) -> (i32, i32) {
    %c0_i32 = arith.constant 0 : i32
    %c0_i32_0 = arith.constant 0 : i32
    return %c0_i32, %arg1 : i32, i32
  }
  func.func @transform_5(%arg0: i32, %arg1: i32) -> (i32, i32, i32) {
    %c0_i32 = arith.constant 0 : i32
    %c0_i32_0 = arith.constant 0 : i32
    return %arg0, %c0_i32, %arg1 : i32, i32, i32
  }
  func.func @transform_6(%arg0: i32, %arg1: i32) -> (i32, i32, i32) {
    %c0_i32 = arith.constant 0 : i32
    %c0_i32_0 = arith.constant 0 : i32
    return %arg0, %c0_i32, %arg1 : i32, i32, i32
  }
}

</mosaic_0001>

<llo_original>
// kernel: tpu_custom_call.1
$region0: #{tpu_custom_call.1}
  #allocation0 [shape = 'u32[]', space=smem, size = 0x4, offset = 0x4, fixed_abs, tag = 'smem constant byte address 0x4 - core index']
  #allocation1 [shape = 'u32[144,128]{1,0:T(1,128)}', space=vmem, size = 0x12000, scoped, tag = 'internal scratch']
  #allocation2 [shape = 'f32[16,128]{1,0:T(8,128)}', space=vmem, size = 0x2000, scoped, tag = 'scratch operand']
  #allocation3 [shape = 'f32[16,128]{1,0:T(8,128)}', space=vmem, size = 0x2000, scoped, tag = 'scratch operand']
  %s0 = inlined_call_operand.vmem [shape: f32[4,8,16], index: 0, kind: input, shape index: {}]
  %s1 = inlined_call_operand.vmem [shape: f32[4,8,1], index: 1, kind: input, shape index: {}]
  %s2 = inlined_call_operand.vmem [shape: f32[4,8,1], index: 2, kind: input, shape index: {}]
  %s3 = inlined_call_operand.vmem [shape: f32[1,128], index: 3, kind: input, shape index: {}]
  %s4 = inlined_call_operand.vmem [shape: f32[1,128], index: 4, kind: input, shape index: {}]
  %s5 = inlined_call_operand.hbm [shape: f32[4,8,128], index: 5, kind: output, shape index: {0}]
  %s6 = inlined_call_operand.hbm [shape: f32[4,8,128], index: 6, kind: output, shape index: {1}]
  %7 = xla_tuple %s5, %s6
  %s8 = sld [smem:[#allocation0]]
  $region61: #{tpu_custom_call.1} parent=0
    _
  %s10 = ssub.s32 1, %s8
  %s11 = scalar_select 0, %s10, %s8
  $region1: #{tpu_custom_call.1} parent=0
    #allocation4 [shape = 'u8[8192]{0}', space=vmem, size = 0x2000, scoped, tag = 'output window, operand 0']
    #allocation5 [shape = 's32[2]{0}', space=sflag, size = 0x8, scoped, tag = 'scoped memory for tpu_custom_call.1']
    #allocation6 [shape = 'u8[8192]{0}', space=vmem, size = 0x2000, scoped, tag = 'output window, operand 1']
    #allocation7 [shape = 's32[2]{0}', space=sflag, size = 0x8, scoped, tag = 'scoped memory for tpu_custom_call.1']
    %12 = vsyncpa [#allocation5], 0
    %s13 = scalar_lea.sflag [#allocation5], 1
    %14 = vsyncpa %s13, 0
    %15 = vsyncpa [#allocation7], 0
    %s16 = scalar_lea.sflag [#allocation7], 1
    %17 = vsyncpa %s16, 0
    loop: start=0, step=1, limit=6
    $region2: #{tpu_custom_call.1} parent=1 // loop_pre_header
      _
    $region3: #{tpu_custom_call.1} parent=1 // loop_header
      %s19 = sphi 0, %s23
      %p20 = scmp.ge.s32.totalorder %s19, 6
      %s26 = sphi 0, %s38
      %s27 = sphi 0, %s34
      %s28 = sphi 0, %s26
      %s29 = sphi 0, %s27
      %s30 = sphi 0, %s28
      %s31 = sphi 0, %s29
      %s41 = sphi 0, %s43
      %s44 = sphi 0, %s41
      %s45 = sphi 0, %s44
      %s61 = sphi 0, %s45
      %s67 = sphi 0, %s69
      %s70 = sphi 0, %s67
      %s71 = sphi 0, %s70
      %s87 = sphi 0, %s71
      %s93 = sphi 0, %s95
      %s96 = sphi 0, %s93
      %s97 = sphi 0, %s96
      %s113 = sphi 0, %s97
      %s119 = sphi 0, %s121
      %s122 = sphi 0, %s119
      %s123 = sphi 0, %s122
      %s139 = sphi 0, %s123
      %s145 = sphi 0, %s147
      %s148 = sphi 0, %s145
      %s149 = sphi 0, %s148
      %s165 = sphi 0, %s149
      %s173 = sphi 0, %s175
      %s176 = sphi 0, %s173
      %s177 = sphi 0, %s176
      %s193 = sphi 0, %s177
      %s201 = sphi 0, %s203
      %s204 = sphi 0, %s201
      %s205 = sphi 0, %s204
      %s221 = sphi 0, %s205
    $region4: #{tpu_custom_call.1} parent=1 // loop_header_branch
      %22 = sbr.rel (%p20) target = $region8
    $region5: #{tpu_custom_call.1} parent=1 // loop_body
      %s24 = ssub.s32 %s19, 1
      %s25 = ssub.s32 %s19, 2
      %s32 = sadd.s32 1, %s27
      %p33 = scmp.ge.s32.totalorder %s32, 1
      %s34 = scalar_select %p33, 0, %s32
      %s35 = sadd.s32 1, %s26
      %s36 = scalar_select %p33, %s35, %s26
      %p37 = scmp.ge.s32.totalorder %s36, 4
      %s38 = scalar_select %p37, 0, %s36
      %s39 = ssub.s32 %s26, %s38
      %p40 = scmp.eq.s32.totalorder %s39, 0
      %s42 = sadd.s32 %s41, 1
      %s43 = scalar_select %p40, %s41, %s42
      %p46 = pneg %p40
      %p47 = scmp.eq.s32.totalorder %s19, 3
      %p48 = por %p46, %p47
      %p49 = scmp.ne.s32.totalorder %s41, %s44
      %p50 = scmp.eq.s32.totalorder %s19, 0
      %p51 = por %p49, %p50
      %p52 = scmp.ne.s32.totalorder %s41, %s44
      %p53 = scmp.eq.s32.totalorder %s24, 3
      %p54 = por %p52, %p53
      %p55 = scmp.ne.s32.totalorder %s44, %s45
      %p56 = scmp.eq.s32.totalorder %s24, 0
      %p57 = por %p55, %p56
      %p58 = scmp.ne.s32.totalorder %s44, %s45
      %p59 = scmp.eq.s32.totalorder %s25, 3
      %p60 = por %p58, %p59
      %p62 = scmp.ne.s32.totalorder %s45, %s61
      %p63 = scmp.eq.s32.totalorder %s25, 0
      %p64 = por %p62, %p63
      %s65 = ssub.s32 %s26, %s38
      %p66 = scmp.eq.s32.totalorder %s65, 0
      %s68 = sadd.s32 %s67, 1
      %s69 = scalar_select %p66, %s67, %s68
      %p72 = pneg %p66
      %p73 = scmp.eq.s32.totalorder %s19, 3
      %p74 = por %p72, %p73
      %p75 = scmp.ne.s32.totalorder %s67, %s70
      %p76 = scmp.eq.s32.totalorder %s19, 0
      %p77 = por %p75, %p76
      %p78 = scmp.ne.s32.totalorder %s67, %s70
      %p79 = scmp.eq.s32.totalorder %s24, 3
      %p80 = por %p78, %p79
      %p81 = scmp.ne.s32.totalorder %s70, %s71
      %p82 = scmp.eq.s32.totalorder %s24, 0
      %p83 = por %p81, %p82
      %p84 = scmp.ne.s32.totalorder %s70, %s71
      %p85 = scmp.eq.s32.totalorder %s25, 3
      %p86 = por %p84, %p85
      %p88 = scmp.ne.s32.totalorder %s71, %s87
      %p89 = scmp.eq.s32.totalorder %s25, 0
      %p90 = por %p88, %p89
      %s91 = ssub.s32 %s26, %s38
      %p92 = scmp.eq.s32.totalorder %s91, 0
      %s94 = sadd.s32 %s93, 1
      %s95 = scalar_select %p92, %s93, %s94
      %p98 = pneg %p92
      %p99 = scmp.eq.s32.totalorder %s19, 3
      %p100 = por %p98, %p99
      %p101 = scmp.ne.s32.totalorder %s93, %s96
      %p102 = scmp.eq.s32.totalorder %s19, 0
      %p103 = por %p101, %p102
      %p104 = scmp.ne.s32.totalorder %s93, %s96
      %p105 = scmp.eq.s32.totalorder %s24, 3
      %p106 = por %p104, %p105
      %p107 = scmp.ne.s32.totalorder %s96, %s97
      %p108 = scmp.eq.s32.totalorder %s24, 0
      %p109 = por %p107, %p108
      %p110 = scmp.ne.s32.totalorder %s96, %s97
      %p111 = scmp.eq.s32.totalorder %s25, 3
      %p112 = por %p110, %p111
      %p114 = scmp.ne.s32.totalorder %s97, %s113
      %p115 = scmp.eq.s32.totalorder %s25, 0
      %p116 = por %p114, %p115
      %s117 = ssub.s32 %s27, %s34
      %p118 = scmp.eq.s32.totalorder %s117, 0
      %s120 = sadd.s32 %s119, 1
      %s121 = scalar_select %p118, %s119, %s120
      %p124 = pneg %p118
      %p125 = scmp.eq.s32.totalorder %s19, 3
      %p126 = por %p124, %p125
      %p127 = scmp.ne.s32.totalorder %s119, %s122
      %p128 = scmp.eq.s32.totalorder %s19, 0
      %p129 = por %p127, %p128
      %p130 = scmp.ne.s32.totalorder %s119, %s122
      %p131 = scmp.eq.s32.totalorder %s24, 3
      %p132 = por %p130, %p131
      %p133 = scmp.ne.s32.totalorder %s122, %s123
      %p134 = scmp.eq.s32.totalorder %s24, 0
      %p135 = por %p133, %p134
      %p136 = scmp.ne.s32.totalorder %s122, %s123
      %p137 = scmp.eq.s32.totalorder %s25, 3
      %p138 = por %p136, %p137
      %p140 = scmp.ne.s32.totalorder %s123, %s139
      %p141 = scmp.eq.s32.totalorder %s25, 0
      %p142 = por %p140, %p141
      %s143 = ssub.s32 %s27, %s34
      %p144 = scmp.eq.s32.totalorder %s143, 0
      %s146 = sadd.s32 %s145, 1
      %s147 = scalar_select %p144, %s145, %s146
      %p150 = pneg %p144
      %p151 = scmp.eq.s32.totalorder %s19, 3
      %p152 = por %p150, %p151
      %p153 = scmp.ne.s32.totalorder %s145, %s148
      %p154 = scmp.eq.s32.totalorder %s19, 0
      %p155 = por %p153, %p154
      %p156 = scmp.ne.s32.totalorder %s145, %s148
      %p157 = scmp.eq.s32.totalorder %s24, 3
      %p158 = por %p156, %p157
      %p159 = scmp.ne.s32.totalorder %s148, %s149
      %p160 = scmp.eq.s32.totalorder %s24, 0
      %p161 = por %p159, %p160
      %p162 = scmp.ne.s32.totalorder %s148, %s149
      %p163 = scmp.eq.s32.totalorder %s25, 3
      %p164 = por %p162, %p163
      %p166 = scmp.ne.s32.totalorder %s149, %s165
      %p167 = scmp.eq.s32.totalorder %s25, 0
      %p168 = por %p166, %p167
      %s169 = ssub.s32 %s26, %s38
      %s170 = ssub.s32 %s27, %s34
      %s171 = sor.u32 %s169, %s170
      %p172 = scmp.eq.s32.totalorder %s171, 0
      %s174 = sadd.s32 %s173, 1
      %s175 = scalar_select %p172, %s173, %s174
      %p178 = pneg %p172
      %p179 = scmp.eq.s32.totalorder %s19, 3
      %p180 = por %p178, %p179
      %p181 = scmp.ne.s32.totalorder %s173, %s176
      %p182 = scmp.eq.s32.totalorder %s19, 0
      %p183 = por %p181, %p182
      %p184 = scmp.ne.s32.totalorder %s173, %s176
      %p185 = scmp.eq.s32.totalorder %s24, 3
      %p186 = por %p184, %p185
      %p187 = scmp.ne.s32.totalorder %s176, %s177
      %p188 = scmp.eq.s32.totalorder %s24, 0
      %p189 = por %p187, %p188
      %p190 = scmp.ne.s32.totalorder %s176, %s177
      %p191 = scmp.eq.s32.totalorder %s25, 3
      %p192 = por %p190, %p191
      %p194 = scmp.ne.s32.totalorder %s177, %s193
      %p195 = scmp.eq.s32.totalorder %s25, 0
      %p196 = por %p194, %p195
      %s197 = ssub.s32 %s26, %s38
      %s198 = ssub.s32 %s27, %s34
      %s199 = sor.u32 %s197, %s198
      %p200 = scmp.eq.s32.totalorder %s199, 0
      %s202 = sadd.s32 %s201, 1
      %s203 = scalar_select %p200, %s201, %s202
      %p206 = pneg %p200
      %p207 = scmp.eq.s32.totalorder %s19, 3
      %p208 = por %p206, %p207
      %p209 = scmp.ne.s32.totalorder %s201, %s204
      %p210 = scmp.eq.s32.totalorder %s19, 0
      %p211 = por %p209, %p210
      %p212 = scmp.ne.s32.totalorder %s201, %s204
      %p213 = scmp.eq.s32.totalorder %s24, 3
      %p214 = por %p212, %p213
      %p215 = scmp.ne.s32.totalorder %s204, %s205
      %p216 = scmp.eq.s32.totalorder %s24, 0
      %p217 = por %p215, %p216
      %p218 = scmp.ne.s32.totalorder %s204, %s205
      %p219 = scmp.eq.s32.totalorder %s25, 3
      %p220 = por %p218, %p219
      %p222 = scmp.ne.s32.totalorder %s205, %s221
      %p223 = scmp.eq.s32.totalorder %s25, 0
      %p224 = por %p222, %p223
      %p225 = scmp.le.s32.totalorder 1, %s19
      %p226 = scmp.lt.s32.totalorder %s19, 5
      %p227 = pnand %p225, %p226
      %p228 = pneg %p227
      // Predicated region
      $region9: #{tpu_custom_call.1} parent=5 // pred_check
        _
      $region10: #{tpu_custom_call.1} parent=5 // pred_check_branch
        %230 = sbr.rel (%p227) target = $region12
      $region11: #{tpu_custom_call.1} parent=5 // pred_region
        %s231 = ssub.s32 %s19, 1
        // Predicated region
        $region13: #{tpu_custom_call.1} parent=11 // pred_check
          %p232 = pneg %p135
        $region14: #{tpu_custom_call.1} parent=11 // pred_check_branch
          %234 = sbr.rel (%p232) target = $region16
        $region15: #{tpu_custom_call.1} parent=11 // pred_region
          %p235 = scmp.lt.s32.totalorder %s29, 0
          %s236 = scalar_select %p235, %s29, 0
          %s237 = scalar_lea.vmem %s3, %s236
        $region16: #{tpu_custom_call.1} parent=11 // pred_fallthru
          _
        // Predicated region
        $region17: #{tpu_custom_call.1} parent=11 // pred_check
          %p238 = pneg %p161
        $region18: #{tpu_custom_call.1} parent=11 // pred_check_branch
          %240 = sbr.rel (%p238) target = $region20
        $region19: #{tpu_custom_call.1} parent=11 // pred_region
          %p241 = scmp.lt.s32.totalorder %s29, 0
          %s242 = scalar_select %p241, %s29, 0
          %s243 = scalar_lea.vmem %s4, %s242
        $region20: #{tpu_custom_call.1} parent=11 // pred_fallthru
          _
      $region12: #{tpu_custom_call.1} parent=5 // pred_fallthru
        _
      %p244 = scmp.lt.s32.totalorder %s19, 4
      // Predicated region
      $region21: #{tpu_custom_call.1} parent=5 // pred_check
        %p245 = pneg %p244
      $region22: #{tpu_custom_call.1} parent=5 // pred_check_branch
        %247 = sbr.rel (%p245) target = $region24
      $region23: #{tpu_custom_call.1} parent=5 // pred_region
        // Predicated region
        $region25: #{tpu_custom_call.1} parent=23 // pred_check
          %p248 = pneg %p51
        $region26: #{tpu_custom_call.1} parent=23 // pred_check_branch
          %250 = sbr.rel (%p248) target = $region28
        $region27: #{tpu_custom_call.1} parent=23 // pred_region
          %p251 = scmp.lt.s32.totalorder %s26, 3
          %s252 = scalar_select %p251, %s26, 3
          %s253 = smul.addr %s252, 8
          %s254 = scalar_lea.vmem %s0, %s253
        $region28: #{tpu_custom_call.1} parent=23 // pred_fallthru
          _
        // Predicated region
        $region29: #{tpu_custom_call.1} parent=23 // pred_check
          %p255 = pneg %p77
        $region30: #{tpu_custom_call.1} parent=23 // pred_check_branch
          %257 = sbr.rel (%p255) target = $region32
        $region31: #{tpu_custom_call.1} parent=23 // pred_region
          %p258 = scmp.lt.s32.totalorder %s26, 3
          %s259 = scalar_select %p258, %s26, 3
          %s260 = smul.addr %s259, 8
          %s261 = scalar_lea.vmem %s1, %s260
        $region32: #{tpu_custom_call.1} parent=23 // pred_fallthru
          _
        // Predicated region
        $region33: #{tpu_custom_call.1} parent=23 // pred_check
          %p262 = pneg %p103
        $region34: #{tpu_custom_call.1} parent=23 // pred_check_branch
          %264 = sbr.rel (%p262) target = $region36
        $region35: #{tpu_custom_call.1} parent=23 // pred_region
          %p265 = scmp.lt.s32.totalorder %s26, 3
          %s266 = scalar_select %p265, %s26, 3
          %s267 = smul.addr %s266, 8
          %s268 = scalar_lea.vmem %s2, %s267
        $region36: #{tpu_custom_call.1} parent=23 // pred_fallthru
          _
      $region24: #{tpu_custom_call.1} parent=5 // pred_fallthru
        _
      %p269 = scmp.le.s32.totalorder 1, %s19
      %p270 = scmp.lt.s32.totalorder %s19, 5
      %p271 = pnand %p269, %p270
      %p272 = pneg %p271
      // Predicated region
      $region37: #{tpu_custom_call.1} parent=5 // pred_check
        _
      $region38: #{tpu_custom_call.1} parent=5 // pred_check_branch
        %274 = sbr.rel (%p271) target = $region40
      $region39: #{tpu_custom_call.1} parent=5 // pred_region
        %s275 = ssub.s32 %s19, 1
        %p276 = scmp.lt.s32.totalorder %s28, 3
        %s277 = scalar_select %p276, %s28, 3
        %s278 = smul.addr %s277, 8
        %s279 = scalar_lea.vmem %s0, %s278
        %p280 = pneg %p57
        %p281 = pneg %p54
        %p282 = scmp.lt.s32.totalorder %s28, 3
        %s283 = scalar_select %p282, %s28, 3
        %s284 = smul.addr %s283, 8
        %s285 = scalar_lea.vmem %s1, %s284
        %p286 = pneg %p83
        %p287 = pneg %p80
        %p288 = scmp.lt.s32.totalorder %s28, 3
        %s289 = scalar_select %p288, %s28, 3
        %s290 = smul.addr %s289, 8
        %s291 = scalar_lea.vmem %s2, %s290
        %p292 = pneg %p109
        %p293 = pneg %p106
        %p294 = scmp.lt.s32.totalorder %s29, 0
        %s295 = scalar_select %p294, %s29, 0
        %s296 = scalar_lea.vmem %s3, %s295
        %p297 = pneg %p135
        %p298 = pneg %p132
        %p299 = scmp.lt.s32.totalorder %s29, 0
        %s300 = scalar_select %p299, %s29, 0
        %s301 = scalar_lea.vmem %s4, %s300
        %p302 = pneg %p161
        %p303 = pneg %p158
        %p304 = pneg %p189
        %p305 = pneg %p186
        %s306 = sand.u32 %s176, 1
        %s307 = scalar_lea.sflag [#allocation5], %s306
        %s308 = sand.u32 %s176, 1
        %s309 = smul.addr %s308, 8
        %s310 = scalar_lea.vmem [#allocation4], %s309
        %p311 = pneg %p217
        %p312 = pneg %p214
        %s313 = sand.u32 %s204, 1
        %s314 = scalar_lea.sflag [#allocation7], %s313
        %s315 = sand.u32 %s204, 1
        %s316 = smul.addr %s315, 8
        %s317 = scalar_lea.vmem [#allocation6], %s316
        %p318 = scmp.lt.s32.totalorder %s28, 3
        %s319 = scalar_select %p318, %s28, 3
        %s320 = smul.addr %s319, 8
        %s321 = scalar_lea.vmem %s0, %s320
        %p322 = scmp.lt.s32.totalorder %s28, 3
        %s323 = scalar_select %p322, %s28, 3
        %s324 = smul.addr %s323, 8
        %s325 = scalar_lea.vmem %s1, %s324
        %p326 = scmp.lt.s32.totalorder %s28, 3
        %s327 = scalar_select %p326, %s28, 3
        %s328 = smul.addr %s327, 8
        %s329 = scalar_lea.vmem %s2, %s328
        %p330 = scmp.lt.s32.totalorder %s29, 0
        %s331 = scalar_select %p330, %s29, 0
        %s332 = scalar_lea.vmem %s3, %s331
        %p333 = scmp.lt.s32.totalorder %s29, 0
        %s334 = scalar_select %p333, %s29, 0
        %s335 = scalar_lea.vmem %s4, %s334
        %v336 = vld [vmem:[%s325] sm:$0xff]
        %v337 = vld [vmem:[%s329] sm:$0xff]
        %v338 = vld [vmem:[%s332] sm:$0x1]
        %v339 = vld [vmem:[%s335] sm:$0x1]
        %v341 = vlaneseq
        %v342 = vshrl.u32 %v341, 7
        %v343 = vsub.s32 0, %v342
        %v344 = vrot.slane %v338, %v343
        %347 = vset.pattern.permute.xlu0 0
        %348 = vperm.xlu0 %347, %v336
        %v349 = vpop.permute.xlu0 %348
        %v351 = vsub.f32 %v344, %v349
        %v353 = vlaneseq
        %v354 = vshrl.u32 %v353, 7
        %v355 = vsub.s32 0, %v354
        %v356 = vrot.slane %v339, %v355
        %359 = vset.pattern.permute.xlu0 0
        %360 = vperm.xlu0 %359, %v337
        %v361 = vpop.permute.xlu0 %360
        %v363 = vsub.f32 %v356, %v361
        %v364 = vadd.f32 %v356, %v361
        %v365 = vmul.f32 %v351, %v351
        %v366 = vmul.f32 %v363, %v363
        %v367 = vadd.f32 %v365, %v366
        %v368 = vmul.f32 %v364, %v364
        %v369 = vadd.f32 %v365, %v368
        %v370 = vrcp.pop %v367
        %v371 = vmul.f32 %v367, %v370
        %v372 = vsub.f32 2.0, %v371
        %v373 = vmul.f32 %v370, %v372
        %v374 = vrcp.pop %v369
        %v375 = vmul.f32 %v369, %v374
        %v376 = vsub.f32 2.0, %v375
        %v377 = vmul.f32 %v374, %v376
        %v378 = vmul.f32 %v363, %v373
        %v379 = vmul.f32 %v364, %v377
        %v380 = vadd.f32 %v373, %v377
        %v381 = vmul.f32 %v351, %v380
        %382 = vst [vmem:[#allocation2] sm:$0xff] %v381
        %v383 = vsub.f32 %v378, %v379
        %384 = vst [vmem:[#allocation2 + $0x8] sm:$0xff] %v383
        %v385 = vadd.f32 %v378, %v379
        %v386 = vsub.f32 0.0, %v385
        %387 = vst [vmem:[#allocation3] sm:$0xff] %v386
        %v388 = vsub.f32 %v373, %v377
        %v389 = vmul.f32 %v351, %v388
        %390 = vst [vmem:[#allocation3 + $0x8] sm:$0xff] %v389
        %v391 = vld [vmem:[%s321] sm:$0xff]
        %v392 = vld [vmem:[#allocation2] sm:$0xff]
        %v393 = vld [vmem:[#allocation2 + $0x8] sm:$0xff]
        %vm394 = vcmask 130048
        %v396 = vsel %vm394, %v391, 0
        %398 = vmatprep.subr.mxu0 0.0
        %399 = vmatpush1.msra.mxu0 %v392
        %400 = vmatprep.subr.mxu0 0.0
        %401 = vmatpush1.msra.mxu0 %v393
        %402 = vmatprep.subr.mxu0 0.0
        %403 = vmatpush1.msra.mxu0 0.0
        %404 = vmatprep.subr.mxu0 0.0
        %405 = vmatpush1.msra.mxu0 0.0
        %406 = vmatprep.subr.mxu0 0.0
        %407 = vmatpush1.msra.mxu0 0.0
        %408 = vmatprep.subr.mxu0 0.0
        %409 = vmatpush1.msra.mxu0 0.0
        %410 = vmatprep.subr.mxu0 0.0
        %411 = vmatpush1.msra.mxu0 0.0
        %412 = vmatprep.subr.mxu0 0.0
        %413 = vmatpush1.msra.mxu0 0.0
        %414 = vmatprep.subr.mxu0 0.0
        %415 = vmatpush1.msra.mxu0 0.0
        %416 = vmatprep.subr.mxu0 0.0
        %417 = vmatpush1.msra.mxu0 0.0
        %418 = vmatprep.subr.mxu0 0.0
        %419 = vmatpush1.msra.mxu0 0.0
        %420 = vmatprep.subr.mxu0 0.0
        %421 = vmatpush1.msra.mxu0 0.0
        %422 = vmatprep.subr.mxu0 0.0
        %423 = vmatpush1.msra.mxu0 0.0
        %424 = vmatprep.subr.mxu0 0.0
        %425 = vmatpush1.msra.mxu0 0.0
        %426 = vmatprep.subr.mxu0 0.0
        %427 = vmatpush1.msra.mxu0 0.0
        %428 = vmatprep.subr.mxu0 0.0
        %429 = vmatpush1.msra.mxu0 0.0
        %430 = vmatprep.subr.mxu0 0.0
        %431 = vmatpush1.msra.mxu0 0.0
        %432 = vmatprep.subr.mxu0 0.0
        %433 = vmatpush1.msra.mxu0 0.0
        %434 = vmatprep.subr.mxu0 0.0
        %435 = vmatpush1.msra.mxu0 0.0
        %436 = vmatprep.subr.mxu0 0.0
        %437 = vmatpush1.msra.mxu0 0.0
        %438 = vmatprep.subr.mxu0 0.0
        %439 = vmatpush1.msra.mxu0 0.0
        %440 = vmatprep.subr.mxu0 0.0
        %441 = vmatpush1.msra.mxu0 0.0
        %442 = vmatprep.subr.mxu0 0.0
        %443 = vmatpush1.msra.mxu0 0.0
        %444 = vmatprep.subr.mxu0 0.0
        %445 = vmatpush1.msra.mxu0 0.0
        %446 = vmatprep.subr.mxu0 0.0
        %447 = vmatpush1.msra.mxu0 0.0
        %448 = vmatprep.subr.mxu0 0.0
        %449 = vmatpush1.msra.mxu0 0.0
        %450 = vmatprep.subr.mxu0 0.0
        %451 = vmatpush1.msra.mxu0 0.0
        %452 = vmatprep.subr.mxu0 0.0
        %453 = vmatpush1.msra.mxu0 0.0
        %454 = vmatprep.subr.mxu0 0.0
        %455 = vmatpush1.msra.mxu0 0.0
        %456 = vmatprep.subr.mxu0 0.0
        %457 = vmatpush1.msra.mxu0 0.0
        %458 = vmatprep.subr.mxu0 0.0
        %459 = vmatpush1.msra.mxu0 0.0
        %460 = vmatprep.subr.mxu0 0.0
        %461 = vmatpush1.msra.mxu0 0.0
        %462 = vmatprep.mubr.f32.mxu0 0.0
        %463 = vmatmul.mubr.f32.gmra.mrb[0].mxu0 %v396
        %v464 = vpop.f32.mrb[0].mxu0
        %v465 = vadd.f32 0.0, %v464
        %v466 = vpop.f32.mrb[0].mxu0
        %467 = vdwg.mxu0
        %468 = vst [vmem:[%s310] sm:$0xff] %v465
        %v469 = vld [vmem:[#allocation3] sm:$0xff]
        %v470 = vld [vmem:[#allocation3 + $0x8] sm:$0xff]
        %471 = vmatprep.subr.mxu0 0.0
        %472 = vmatpush1.msra.mxu0 %v469
        %473 = vmatprep.subr.mxu0 0.0
        %474 = vmatpush1.msra.mxu0 %v470
        %475 = vmatprep.subr.mxu0 0.0
        %476 = vmatpush1.msra.mxu0 0.0
        %477 = vmatprep.subr.mxu0 0.0
        %478 = vmatpush1.msra.mxu0 0.0
        %479 = vmatprep.subr.mxu0 0.0
        %480 = vmatpush1.msra.mxu0 0.0
        %481 = vmatprep.subr.mxu0 0.0
        %482 = vmatpush1.msra.mxu0 0.0
        %483 = vmatprep.subr.mxu0 0.0
        %484 = vmatpush1.msra.mxu0 0.0
        %485 = vmatprep.subr.mxu0 0.0
        %486 = vmatpush1.msra.mxu0 0.0
        %487 = vmatprep.subr.mxu0 0.0
        %488 = vmatpush1.msra.mxu0 0.0
        %489 = vmatprep.subr.mxu0 0.0
        %490 = vmatpush1.msra.mxu0 0.0
        %491 = vmatprep.subr.mxu0 0.0
        %492 = vmatpush1.msra.mxu0 0.0
        %493 = vmatprep.subr.mxu0 0.0
        %494 = vmatpush1.msra.mxu0 0.0
        %495 = vmatprep.subr.mxu0 0.0
        %496 = vmatpush1.msra.mxu0 0.0
        %497 = vmatprep.subr.mxu0 0.0
        %498 = vmatpush1.msra.mxu0 0.0
        %499 = vmatprep.subr.mxu0 0.0
        %500 = vmatpush1.msra.mxu0 0.0
        %501 = vmatprep.subr.mxu0 0.0
        %502 = vmatpush1.msra.mxu0 0.0
        %503 = vmatprep.subr.mxu0 0.0
        %504 = vmatpush1.msra.mxu0 0.0
        %505 = vmatprep.subr.mxu0 0.0
        %506 = vmatpush1.msra.mxu0 0.0
        %507 = vmatprep.subr.mxu0 0.0
        %508 = vmatpush1.msra.mxu0 0.0
        %509 = vmatprep.subr.mxu0 0.0
        %510 = vmatpush1.msra.mxu0 0.0
        %511 = vmatprep.subr.mxu0 0.0
        %512 = vmatpush1.msra.mxu0 0.0
        %513 = vmatprep.subr.mxu0 0.0
        %514 = vmatpush1.msra.mxu0 0.0
        %515 = vmatprep.subr.mxu0 0.0
        %516 = vmatpush1.msra.mxu0 0.0
        %517 = vmatprep.subr.mxu0 0.0
        %518 = vmatpush1.msra.mxu0 0.0
        %519 = vmatprep.subr.mxu0 0.0
        %520 = vmatpush1.msra.mxu0 0.0
        %521 = vmatprep.subr.mxu0 0.0
        %522 = vmatpush1.msra.mxu0 0.0
        %523 = vmatprep.subr.mxu0 0.0
        %524 = vmatpush1.msra.mxu0 0.0
        %525 = vmatprep.subr.mxu0 0.0
        %526 = vmatpush1.msra.mxu0 0.0
        %527 = vmatprep.subr.mxu0 0.0
        %528 = vmatpush1.msra.mxu0 0.0
        %529 = vmatprep.subr.mxu0 0.0
        %530 = vmatpush1.msra.mxu0 0.0
        %531 = vmatprep.subr.mxu0 0.0
        %532 = vmatpush1.msra.mxu0 0.0
        %533 = vmatprep.subr.mxu0 0.0
        %534 = vmatpush1.msra.mxu0 0.0
        %535 = vmatprep.mubr.f32.mxu0 0.0
        %536 = vmatmul.mubr.f32.gmra.mrb[0].mxu0 %v396
        %v537 = vpop.f32.mrb[0].mxu0
        %v538 = vadd.f32 0.0, %v537
        %v539 = vpop.f32.mrb[0].mxu0
        %540 = vdwg.mxu0
        %541 = vst [vmem:[%s317] sm:$0xff] %v538
        %s542 = sand.u32 %s176, 1
        %s543 = scalar_lea.sflag [#allocation5], %s542
        %s544 = sand.u32 %s176, 1
        %s545 = smul.addr %s544, 8
        %s546 = scalar_lea.vmem [#allocation4], %s545
        %s547 = sand.u32 %s204, 1
        %s548 = scalar_lea.sflag [#allocation7], %s547
        %s549 = sand.u32 %s204, 1
        %s550 = smul.addr %s549, 8
        %s551 = scalar_lea.vmem [#allocation6], %s550
        // Predicated region
        $region41: #{tpu_custom_call.1} parent=39 // pred_check
          %p552 = pneg %p186
        $region42: #{tpu_custom_call.1} parent=39 // pred_check_branch
          %554 = sbr.rel (%p552) target = $region44
        $region43: #{tpu_custom_call.1} parent=39 // pred_region
          %s556 = ssub.s32 128, 128
          %557 = vsyncadd %s543, %s556
          %s558 = sadd.s32 %s29, %s28
          %s559 = smul.addr %s558, 128
          %s560 = scalar_lea.hbm %s5, %s559
          %s562 = sshll.u32 %s546, 4
          %s563 = int_to_ptr.vmem [resolvable:$true] %s562
          %565 = dma.vmem_to_hbm [thread:$0]  %s563, 128, %s560, %s543
        $region44: #{tpu_custom_call.1} parent=39 // pred_fallthru
          _
        // Predicated region
        $region45: #{tpu_custom_call.1} parent=39 // pred_check
          %p566 = pneg %p214
        $region46: #{tpu_custom_call.1} parent=39 // pred_check_branch
          %568 = sbr.rel (%p566) target = $region48
        $region47: #{tpu_custom_call.1} parent=39 // pred_region
          %s570 = ssub.s32 128, 128
          %571 = vsyncadd %s548, %s570
          %s572 = sadd.s32 %s29, %s28
          %s573 = smul.addr %s572, 128
          %s574 = scalar_lea.hbm %s6, %s573
          %s576 = sshll.u32 %s551, 4
          %s577 = int_to_ptr.vmem [resolvable:$true] %s576
          %579 = dma.vmem_to_hbm [thread:$0]  %s577, 128, %s574, %s548
        $region48: #{tpu_custom_call.1} parent=39 // pred_fallthru
          _
      $region40: #{tpu_custom_call.1} parent=5 // pred_fallthru
        _
      %p580 = scmp.le.s32.totalorder 2, %s19
      // Predicated region
      $region49: #{tpu_custom_call.1} parent=5 // pred_check
        %p581 = pneg %p580
      $region50: #{tpu_custom_call.1} parent=5 // pred_check_branch
        %583 = sbr.rel (%p581) target = $region52
      $region51: #{tpu_custom_call.1} parent=5 // pred_region
        %s584 = ssub.s32 %s19, 2
        // Predicated region
        $region53: #{tpu_custom_call.1} parent=51 // pred_check
          %p585 = pneg %p192
        $region54: #{tpu_custom_call.1} parent=51 // pred_check_branch
          %587 = sbr.rel (%p585) target = $region56
        $region55: #{tpu_custom_call.1} parent=51 // pred_region
          %s588 = sand.u32 %s177, 1
          %s589 = scalar_lea.sflag [#allocation5], %s588
          %s590 = sand.u32 %s177, 1
          %s591 = smul.addr %s590, 8
          %s592 = scalar_lea.vmem [#allocation4], %s591
          %593 = dma.done %s589, 128
        $region56: #{tpu_custom_call.1} parent=51 // pred_fallthru
          _
        // Predicated region
        $region57: #{tpu_custom_call.1} parent=51 // pred_check
          %p594 = pneg %p220
        $region58: #{tpu_custom_call.1} parent=51 // pred_check_branch
          %596 = sbr.rel (%p594) target = $region60
        $region59: #{tpu_custom_call.1} parent=51 // pred_region
          %s597 = sand.u32 %s205, 1
          %s598 = scalar_lea.sflag [#allocation7], %s597
          %s599 = sand.u32 %s205, 1
          %s600 = smul.addr %s599, 8
          %s601 = scalar_lea.vmem [#allocation6], %s600
          %602 = dma.done %s598, 128
        $region60: #{tpu_custom_call.1} parent=51 // pred_fallthru
          _
      $region52: #{tpu_custom_call.1} parent=5 // pred_fallthru
        _
    $region6: #{tpu_custom_call.1} parent=1 // loop_footer
      %s23 = sadd.s32 1, %s19
    $region7: #{tpu_custom_call.1} parent=1 // loop_footer_branch
      %18 = sbr.rel target = $region3
    $region8: #{tpu_custom_call.1} parent=1 // loop_exit
      _
    %603 = vsyncpa [#allocation5], 1
    %s604 = scalar_lea.sflag [#allocation5], 1
    %605 = vsyncpa %s604, 1
    %606 = vsyncpa [#allocation7], 1
    %s607 = scalar_lea.sflag [#allocation7], 1
    %608 = vsyncpa %s607, 1

</llo_original>
